<compile_context>
chip_gen: v6e
topology: v6e:2x2x1
jax: 0.10.0
libtpu: 0.0.40
codegen_flags: <defaults>
</compile_context>

<pallas_src>
import jax
import jax.numpy as jnp
from jax.experimental import pallas as pl
from jax.experimental.pallas import tpu as pltpu


def critic_kernel(x_ref, w1_ref, b1_ref, w2_ref, b2_ref, wq_ref, bq_ref, q_ref):
    # fc1: one MXU push over the packed [state ; action] tile (concat fused on
    # the host side); f32 accumulation, f32 bias/ReLU (portable to v5e).
    h1 = jnp.dot(x_ref[...], w1_ref[...], preferred_element_type=jnp.float32)
    h1 = jnp.maximum(h1 + b1_ref[...], 0.0)

    # fc2: bf16 x bf16 on the MXU, f32 accumulation, f32 bias/ReLU.
    h2 = jnp.dot(h1.astype(jnp.bfloat16), w2_ref[...],
                 preferred_element_type=jnp.float32)
    h2 = jnp.maximum(h2 + b2_ref[...], 0.0)

    # q head (fc2 -> 1): VPU multiply + XLU lane reduction (avoids an MXU push
    # that would use a single column of the systolic array).  bq comes from
    # SMEM as a scalar.  Then flip the (tile_b, 1) column into a lane-dense
    # (1, tile_b) row (cheap XLU transpose) so the output store is unmasked.
    q_col = jnp.sum(h2 * wq_ref[...], axis=-1, keepdims=True) + bq_ref[0]
    q_ref[...] = jnp.transpose(q_col, (1, 0))


def _round_up(x, m):
    return ((x + m - 1) // m) * m


def critic_forward(state, action, params, *, tile_b=1024):
    """Fused SAC critic: q = Wq·relu(W2·relu(W1·[s;a]+b1)+b2)+bq, batch-tiled."""
    w1, b1, w2, b2, wq, bq = params
    B, in_dim = state.shape
    act_dim = action.shape[1]
    cat_dim = in_dim + act_dim
    fc1 = w1.shape[1]
    fc2 = w2.shape[1]
    assert w1.shape[0] == cat_dim

    # Batch tile: as big as the batch allows (amortizes per-step overhead; all
    # weights are VMEM-resident), rounded to 16 rows for bf16 sublane packing.
    # For large batches cap at half the padded batch so v7x's two TensorCores
    # both get a grid step (no-op on single-TC v5e/v6e).
    b16 = _round_up(B, 16)
    tb = _round_up(min(int(tile_b), b16), 16)
    if b16 >= 32:
        tb = min(tb, _round_up(pl.cdiv(b16, 2), 16))
    n_tiles = pl.cdiv(B, tb)
    Bp = n_tiles * tb

    # Fuse the concat on the host: one packed (B, in+act) bf16 operand means a
    # single fc1 MXU push in the kernel.
    x = jnp.concatenate([state, action], axis=1).astype(jnp.bfloat16)
    if Bp != B:
        x = jnp.pad(x, ((0, Bp - B), (0, 0)))

    batch_map = lambda i: (i, 0)   # activations / output: tiled along batch
    pinned = lambda i: (0, 0)      # weights / biases: VMEM-resident across steps

    q_rows = pl.pallas_call(
        critic_kernel,
        out_shape=jax.ShapeDtypeStruct((n_tiles, tb), jnp.float32),
        grid_spec=pltpu.PrefetchScalarGridSpec(
            num_scalar_prefetch=0,
            grid=(n_tiles,),
            in_specs=[
                pl.BlockSpec((tb, cat_dim), batch_map),      # packed [s;a] tile
                pl.BlockSpec((cat_dim, fc1), pinned),        # W1 (bf16)
                pl.BlockSpec((1, fc1), pinned),               # b1 (f32)
                pl.BlockSpec((fc1, fc2), pinned),              # W2 (bf16)
                pl.BlockSpec((1, fc2), pinned),               # b2 (f32)
                pl.BlockSpec((1, fc2), pinned),               # Wq row (f32)
                pl.BlockSpec(memory_space=pltpu.MemorySpace.SMEM),  # bq scalar
            ],
            out_specs=pl.BlockSpec((1, tb), batch_map),       # lane-dense q row
        ),
        compiler_params=pltpu.CompilerParams(
            dimension_semantics=("parallel",)),
    )(x, w1, b1, w2, b2, wq, bq)

    # (n_tiles, tb) row-major == padded batch order; drop padding, back to (B,1).
    return q_rows.reshape(-1, 1)[:B]


def init_linear(key, fan_in, fan_out):
    """Deterministic init mimicking nn.Linear's U(-1/sqrt(fan_in), +1/sqrt(fan_in)).
    Weight returned already transposed to (fan_in, fan_out)."""
    kw, kb = jax.random.split(key)
    bound = 1.0 / jnp.sqrt(jnp.float32(fan_in))
    w = jax.random.uniform(kw, (fan_in, fan_out), jnp.float32, -bound, bound)
    b = jax.random.uniform(kb, (1, fan_out), jnp.float32, -bound, bound)
    return w, b


def make_params(key, input_dims, n_actions, fc1_dims, fc2_dims):
    k1, k2, k3 = jax.random.split(key, 3)
    w1, b1 = init_linear(k1, input_dims + n_actions, fc1_dims)
    w2, b2 = init_linear(k2, fc1_dims, fc2_dims)
    wq, bq = init_linear(k3, fc2_dims, 1)
    # Weights in bf16 (halves HBM->VMEM bytes, MXU-native); biases f32.
    # Wq kept as an f32 row (1 KB) for the VPU reduce; bq as a flat f32 scalar
    # destined for SMEM.
    return (w1.astype(jnp.bfloat16), b1,
            w2.astype(jnp.bfloat16), b2,
            wq.T.astype(jnp.float32), bq.reshape(1))


def ref_forward(state, action, params):
    """Plain-JAX reference of the same math/precision for the cross-check."""
    w1, b1, w2, b2, wq, bq = params
    x = jnp.concatenate([state, action], axis=1).astype(jnp.bfloat16)
    h1 = jnp.dot(x, w1, preferred_element_type=jnp.float32) + b1
    h1 = jnp.maximum(h1, 0.0)
    h2 = jnp.dot(h1.astype(jnp.bfloat16), w2,
                 preferred_element_type=jnp.float32) + b2
    h2 = jnp.maximum(h2, 0.0)
    return jnp.sum(h2 * wq, axis=-1, keepdims=True) + bq[0]


if __name__ == "__main__":
    # Small shapes consistent with the module: input_dims=(8,), n_actions=2.
    batch = 8
    input_dims = 8
    n_actions = 2
    fc1_dims = 256
    fc2_dims = 256

    key = jax.random.PRNGKey(0)
    k_state, k_action, k_param = jax.random.split(key, 3)

    state = jax.random.normal(k_state, (batch, input_dims), jnp.float32)
    action = jax.random.normal(k_action, (batch, n_actions), jnp.float32)
    params = make_params(k_param, input_dims, n_actions, fc1_dims, fc2_dims)

    q = critic_forward(state, action, params)
    jax.block_until_ready(q)
    assert q.shape == (batch, 1)

    q_ref = ref_forward(state, action, params)
    assert jnp.allclose(q, q_ref, atol=1e-2, rtol=1e-2), \
        float(jnp.max(jnp.abs(q - q_ref)))

    # Exercise the multi-tile grid path (grid > 1, pinned weights, batch pad,
    # lane-dense row output reassembled into a column).
    big_b = 44
    ks2, ka2 = jax.random.split(jax.random.PRNGKey(1))
    state2 = jax.random.normal(ks2, (big_b, input_dims), jnp.float32)
    action2 = jax.random.normal(ka2, (big_b, n_actions), jnp.float32)
    q2 = critic_forward(state2, action2, params)
    jax.block_until_ready(q2)
    q2_ref = ref_forward(state2, action2, params)
    assert q2.shape == (big_b, 1)
    assert jnp.allclose(q2, q2_ref, atol=1e-2, rtol=1e-2), \
        float(jnp.max(jnp.abs(q2 - q2_ref)))

    print("KERNEL_OK")
</pallas_src>

<mosaic_0001>
module attributes {stable_mosaic.version = 11 : i64} {
  func.func @critic_kernel(%arg0: i32, %arg1: memref<16x10xbf16, #tpu.memory_space<vmem>>, %arg2: memref<10x256xbf16, #tpu.memory_space<vmem>>, %arg3: memref<1x256xf32, #tpu.memory_space<vmem>>, %arg4: memref<256x256xbf16, #tpu.memory_space<vmem>>, %arg5: memref<1x256xf32, #tpu.memory_space<vmem>>, %arg6: memref<1x256xf32, #tpu.memory_space<vmem>>, %arg7: memref<1xf32, #tpu.memory_space<smem>>, %arg8: memref<1x16xf32, #tpu.memory_space<vmem>>) attributes {dimension_semantics = [#tpu.dimension_semantics<parallel>], iteration_bounds = array<i64: 1>, scalar_prefetch = 0 : i64, scratch_operands = 0 : i64, tpu.core_type = #tpu.core_type<tc>, window_params = [{transform_indices = @transform_0, window_bounds = array<i64: 16, 10>}, {pipeline_mode = #tpu.pipeline_mode<synchronous>, transform_indices = @transform_1, window_bounds = array<i64: 10, 256>}, {pipeline_mode = #tpu.pipeline_mode<synchronous>, transform_indices = @transform_2, window_bounds = array<i64: 1, 256>}, {pipeline_mode = #tpu.pipeline_mode<synchronous>, transform_indices = @transform_3, window_bounds = array<i64: 256, 256>}, {pipeline_mode = #tpu.pipeline_mode<synchronous>, transform_indices = @transform_4, window_bounds = array<i64: 1, 256>}, {pipeline_mode = #tpu.pipeline_mode<synchronous>, transform_indices = @transform_5, window_bounds = array<i64: 1, 256>}, {transform_indices = @transform_6, window_bounds = array<i64: 1>}, {transform_indices = @transform_7, window_bounds = array<i64: 1, 16>}]} {
    %c0 = arith.constant 0 : index
    %c0_0 = arith.constant 0 : index
    %0 = vector.load %arg1[%c0, %c0_0] : memref<16x10xbf16, #tpu.memory_space<vmem>>, vector<16x10xbf16>
    %c0_1 = arith.constant 0 : index
    %c0_2 = arith.constant 0 : index
    %1 = vector.load %arg2[%c0_1, %c0_2] : memref<10x256xbf16, #tpu.memory_space<vmem>>, vector<10x256xbf16>
    %cst = arith.constant dense<0.000000e+00> : vector<16x256xf32>
    %2 = tpu.matmul %0, %1, %cst {dimension_numbers = #tpu.dot_dimension_numbers<[1], [0], [0], [1], [0, 0, 1, 1], [], []>} : vector<16x10xbf16>, vector<10x256xbf16>, vector<16x256xf32> -> vector<16x256xf32>
    %c0_3 = arith.constant 0 : index
    %c0_4 = arith.constant 0 : index
    %3 = vector.load %arg3[%c0_3, %c0_4] : memref<1x256xf32, #tpu.memory_space<vmem>>, vector<1x256xf32>
    %4 = vector.broadcast %3 : vector<1x256xf32> to vector<16x256xf32>
    %5 = arith.addf %2, %4 : vector<16x256xf32>
    %cst_5 = arith.constant 0.000000e+00 : f32
    %6 = vector.broadcast %cst_5 : f32 to vector<16x256xf32>
    %7 = arith.maximumf %5, %6 : vector<16x256xf32>
    %8 = arith.truncf %7 : vector<16x256xf32> to vector<16x256xbf16>
    %c0_6 = arith.constant 0 : index
    %c0_7 = arith.constant 0 : index
    %9 = vector.load %arg4[%c0_6, %c0_7] : memref<256x256xbf16, #tpu.memory_space<vmem>>, vector<256x256xbf16>
    %cst_8 = arith.constant dense<0.000000e+00> : vector<16x256xf32>
    %10 = tpu.matmul %8, %9, %cst_8 {dimension_numbers = #tpu.dot_dimension_numbers<[1], [0], [0], [1], [0, 0, 1, 1], [], []>} : vector<16x256xbf16>, vector<256x256xbf16>, vector<16x256xf32> -> vector<16x256xf32>
    %c0_9 = arith.constant 0 : index
    %c0_10 = arith.constant 0 : index
    %11 = vector.load %arg5[%c0_9, %c0_10] : memref<1x256xf32, #tpu.memory_space<vmem>>, vector<1x256xf32>
    %12 = vector.broadcast %11 : vector<1x256xf32> to vector<16x256xf32>
    %13 = arith.addf %10, %12 : vector<16x256xf32>
    %cst_11 = arith.constant 0.000000e+00 : f32
    %14 = vector.broadcast %cst_11 : f32 to vector<16x256xf32>
    %15 = arith.maximumf %13, %14 : vector<16x256xf32>
    %c0_12 = arith.constant 0 : index
    %c0_13 = arith.constant 0 : index
    %16 = vector.load %arg6[%c0_12, %c0_13] : memref<1x256xf32, #tpu.memory_space<vmem>>, vector<1x256xf32>
    %17 = vector.broadcast %16 : vector<1x256xf32> to vector<16x256xf32>
    %18 = arith.mulf %15, %17 : vector<16x256xf32>
    %cst_14 = arith.constant dense<0.000000e+00> : vector<16xf32>
    %19 = vector.multi_reduction <add>, %18, %cst_14 [1] : vector<16x256xf32> to vector<16xf32>
    %20 = vector.shape_cast %19 : vector<16xf32> to vector<16x1xf32>
    %c0_15 = arith.constant 0 : index
    %21 = memref.load %arg7[%c0_15] : memref<1xf32, #tpu.memory_space<smem>>
    %22 = vector.broadcast %21 : f32 to vector<16x1xf32>
    %23 = arith.addf %20, %22 : vector<16x1xf32>
    %24 = tpu.transpose %23, [1, 0] : vector<16x1xf32> -> vector<1x16xf32>
    %c0_16 = arith.constant 0 : index
    %c0_17 = arith.constant 0 : index
    %25 = vector.load %arg8[%c0_16, %c0_17] : memref<1x16xf32, #tpu.memory_space<vmem>>, vector<1x16xf32>
    tpu.vector_store %arg8[%c0_16, %c0_17], %24 {strides = array<i32>} : memref<1x16xf32, #tpu.memory_space<vmem>>, vector<1x16xf32>,
    return
  }
  func.func @transform_0(%arg0: i32) -> (i32, i32) {
    %c0_i32 = arith.constant 0 : i32
    %c0_i32_0 = arith.constant 0 : i32
    return %arg0, %c0_i32 : i32, i32
  }
  func.func @transform_1(%arg0: i32) -> (i32, i32) {
    %c0_i32 = arith.constant 0 : i32
    %c0_i32_0 = arith.constant 0 : i32
    %c0_i32_1 = arith.constant 0 : i32
    return %c0_i32, %c0_i32_0 : i32, i32
  }
  func.func @transform_2(%arg0: i32) -> (i32, i32) {
    %c0_i32 = arith.constant 0 : i32
    %c0_i32_0 = arith.constant 0 : i32
    %c0_i32_1 = arith.constant 0 : i32
    return %c0_i32, %c0_i32_0 : i32, i32
  }
  func.func @transform_3(%arg0: i32) -> (i32, i32) {
    %c0_i32 = arith.constant 0 : i32
    %c0_i32_0 = arith.constant 0 : i32
    %c0_i32_1 = arith.constant 0 : i32
    return %c0_i32, %c0_i32_0 : i32, i32
  }
  func.func @transform_4(%arg0: i32) -> (i32, i32) {
    %c0_i32 = arith.constant 0 : i32
    %c0_i32_0 = arith.constant 0 : i32
    %c0_i32_1 = arith.constant 0 : i32
    return %c0_i32, %c0_i32_0 : i32, i32
  }
  func.func @transform_5(%arg0: i32) -> (i32, i32) {
    %c0_i32 = arith.constant 0 : i32
    %c0_i32_0 = arith.constant 0 : i32
    %c0_i32_1 = arith.constant 0 : i32
    return %c0_i32, %c0_i32_0 : i32, i32
  }
  func.func @transform_6(%arg0: i32) -> i32 {
    %c0_i32 = arith.constant 0 : i32
    %c0_i32_0 = arith.constant 0 : i32
    return %c0_i32 : i32
  }
  func.func @transform_7(%arg0: i32) -> (i32, i32) {
    %c0_i32 = arith.constant 0 : i32
    %c0_i32_0 = arith.constant 0 : i32
    return %arg0, %c0_i32 : i32, i32
  }
}

</mosaic_0001>

<llo_original>
// kernel: tpu_custom_call.1
$region0: #{tpu_custom_call.1}
  #allocation0 [shape = 'u32[]', space=smem, size = 0x4, offset = 0x4, fixed_abs, tag = 'smem constant byte address 0x4 - core index']
  #allocation1 [shape = 'u32[144,128]{1,0:T(1,128)}', space=vmem, size = 0x12000, scoped, tag = 'internal scratch']
  #allocation2 [shape = 'f32[1]{0:T(128)S(6)}', space=smem, size = 0x200, scoped, tag = 'scoped memory for tpu_custom_call.1']
  %s0 = inlined_call_operand.hbm [shape: bf16[16,10], index: 0, kind: input, shape index: {}]
  %s1 = inlined_call_operand.hbm [shape: bf16[10,256], index: 1, kind: input, shape index: {}]
  %s2 = inlined_call_operand.vmem [shape: f32[1,256], index: 2, kind: input, shape index: {}]
  %s3 = inlined_call_operand.hbm [shape: bf16[256,256], index: 3, kind: input, shape index: {}]
  %s4 = inlined_call_operand.vmem [shape: f32[1,256], index: 4, kind: input, shape index: {}]
  %s5 = inlined_call_operand.vmem [shape: f32[1,256], index: 5, kind: input, shape index: {}]
  %s6 = inlined_call_operand.<no memory space> [shape: f32[1], index: 6, kind: input, shape index: {}]
  %s7 = inlined_call_operand.hbm [shape: f32[1,16], index: 7, kind: output, shape index: {}]
  %s8 = sld [smem:[#allocation0]]
  $region50: #{tpu_custom_call.1} parent=0
    _
  %s10 = ssub.s32 1, %s8
  %s11 = scalar_select 0, %s10, %s8
  %12 = sst [smem:[#allocation2]] %s6
  $region1: #{tpu_custom_call.1} parent=0
    #allocation3 [shape = 'u8[4096]{0}', space=vmem, size = 0x1000, scoped, tag = 'input window, operand 0, single buffered']
    #allocation4 [shape = 's32[1]{0}', space=sflag, size = 0x4, scoped, tag = 'scoped memory for tpu_custom_call.1']
    #allocation5 [shape = 's32[1]{0}', space=sflag, size = 0x4, scoped, tag = 'scoped memory for tpu_custom_call.1']
    #allocation6 [shape = 'u8[8192]{0}', space=vmem, size = 0x2000, scoped, tag = 'input window, operand 1, single buffered']
    #allocation7 [shape = 's32[1]{0}', space=sflag, size = 0x4, scoped, tag = 'scoped memory for tpu_custom_call.1']
    #allocation8 [shape = 'u8[131072]{0}', space=vmem, size = 0x20000, scoped, tag = 'input window, operand 3, single buffered']
    #allocation9 [shape = 'u8[512]{0}', space=vmem, size = 0x400, scoped, tag = 'output window, operand 0, single buffered']
    %13 = vsyncpa [#allocation4], 0
    %14 = vsyncpa [#allocation7], 0
    %15 = vsyncpa [#allocation5], 0
    // Predicated region
    $region2: #{tpu_custom_call.1} parent=1 // pred_check
      _
    $region3: #{tpu_custom_call.1} parent=1 // pred_check_branch
      %17 = sbr.rel (0) target = $region5
    $region4: #{tpu_custom_call.1} parent=1 // pred_region
      %s19 = ssub.s32 128, 128
      %20 = vsyncadd [#allocation4], %s19
      %s21 = sshll.u32 [#allocation3], 4
      %s22 = int_to_ptr.vmem [resolvable:$true] %s21
      %27 = dma.hbm_to_vmem [thread:$0]  %s0, 128, %s22, [#allocation4], 64, 64, 4
    $region5: #{tpu_custom_call.1} parent=1 // pred_fallthru
      _
    // Predicated region
    $region6: #{tpu_custom_call.1} parent=1 // pred_check
      _
    $region7: #{tpu_custom_call.1} parent=1 // pred_check_branch
      %29 = sbr.rel (0) target = $region9
    $region8: #{tpu_custom_call.1} parent=1 // pred_region
      %s31 = ssub.s32 256, 256
      %32 = vsyncadd [#allocation7], %s31
      %s33 = sshll.u32 [#allocation6], 4
      %s34 = int_to_ptr.vmem [resolvable:$true] %s33
      %39 = dma.hbm_to_vmem [thread:$0]  %s1, 256, %s34, [#allocation7], 128, 128, 8
    $region9: #{tpu_custom_call.1} parent=1 // pred_fallthru
      _
    // Predicated region
    $region10: #{tpu_custom_call.1} parent=1 // pred_check
      _
    $region11: #{tpu_custom_call.1} parent=1 // pred_check_branch
      %41 = sbr.rel (0) target = $region13
    $region12: #{tpu_custom_call.1} parent=1 // pred_region
      _
    $region13: #{tpu_custom_call.1} parent=1 // pred_fallthru
      _
    // Predicated region
    $region14: #{tpu_custom_call.1} parent=1 // pred_check
      _
    $region15: #{tpu_custom_call.1} parent=1 // pred_check_branch
      %43 = sbr.rel (0) target = $region17
    $region16: #{tpu_custom_call.1} parent=1 // pred_region
      %s45 = ssub.s32 4096, 4096
      %46 = vsyncadd [#allocation7], %s45
      %s47 = sshll.u32 [#allocation8], 4
      %s48 = int_to_ptr.vmem [resolvable:$true] %s47
      %53 = dma.hbm_to_vmem [thread:$0]  %s3, 4096, %s48, [#allocation7], 128, 128, 8
    $region17: #{tpu_custom_call.1} parent=1 // pred_fallthru
      _
    // Predicated region
    $region18: #{tpu_custom_call.1} parent=1 // pred_check
      _
    $region19: #{tpu_custom_call.1} parent=1 // pred_check_branch
      %55 = sbr.rel (0) target = $region21
    $region20: #{tpu_custom_call.1} parent=1 // pred_region
      _
    $region21: #{tpu_custom_call.1} parent=1 // pred_fallthru
      _
    // Predicated region
    $region22: #{tpu_custom_call.1} parent=1 // pred_check
      _
    $region23: #{tpu_custom_call.1} parent=1 // pred_check_branch
      %57 = sbr.rel (0) target = $region25
    $region24: #{tpu_custom_call.1} parent=1 // pred_region
      _
    $region25: #{tpu_custom_call.1} parent=1 // pred_fallthru
      _
    // Predicated region
    $region26: #{tpu_custom_call.1} parent=1 // pred_check
      _
    $region27: #{tpu_custom_call.1} parent=1 // pred_check_branch
      %59 = sbr.rel (0) target = $region29
    $region28: #{tpu_custom_call.1} parent=1 // pred_region
      _
    $region29: #{tpu_custom_call.1} parent=1 // pred_fallthru
      _
    // Predicated region
    $region30: #{tpu_custom_call.1} parent=1 // pred_check
      _
    $region31: #{tpu_custom_call.1} parent=1 // pred_check_branch
      %61 = sbr.rel (0) target = $region33
    $region32: #{tpu_custom_call.1} parent=1 // pred_region
      %62 = dma.done [#allocation4], 128
    $region33: #{tpu_custom_call.1} parent=1 // pred_fallthru
      _
    // Predicated region
    $region34: #{tpu_custom_call.1} parent=1 // pred_check
      _
    $region35: #{tpu_custom_call.1} parent=1 // pred_check_branch
      %64 = sbr.rel (0) target = $region37
    $region36: #{tpu_custom_call.1} parent=1 // pred_region
      %65 = dma.done [#allocation7], 256
    $region37: #{tpu_custom_call.1} parent=1 // pred_fallthru
      _
    // Predicated region
    $region38: #{tpu_custom_call.1} parent=1 // pred_check
      _
    $region39: #{tpu_custom_call.1} parent=1 // pred_check_branch
      %67 = sbr.rel (0) target = $region41
    $region40: #{tpu_custom_call.1} parent=1 // pred_region
      %68 = dma.done [#allocation7], 4096
    $region41: #{tpu_custom_call.1} parent=1 // pred_fallthru
      _
    %v70 = vld [vmem:[#allocation3] sm:$0xf]
    %v71 = vld [vmem:[#allocation3 + $0x4] sm:$0xf]
    %v72 = vld [vmem:[#allocation6] sm:$0xff]
    %v73 = vld [vmem:[#allocation6 + $0x8] sm:$0x11]
    %v74 = vld [vmem:[%s2] sm:$0x3]
    %v76 = vlaneseq
    %v77 = vshrl.u32 %v76, 7
    %v78 = vsub.s32 0, %v77
    %v79 = vrot.slane %v74, %v78
    %v80 = vlaneseq
    %v81 = vshrl.u32 %v80, 7
    %v82 = vsub.s32 1, %v81
    %v83 = vrot.slane %v74, %v82
    %v88 = vunpack.c.l.b16 %v70
    %v89 = vunpack.c.l.b16 %v71
    %v90 = vpack.c.b16 %v89, %v88
    %v93 = vunpack.c.l.b16 %v72
    %v94 = vunpack.c.h.b16 %v72
    %v95 = vunpack.c.l.b16 %v73
    %v96 = vunpack.c.h.b16 %v73
    %v97 = vpack.c.b16 %v95, %v93
    %v98 = vpack.c.b16 %v96, %v94
    %vm99 = vcmask 80896
    %v101 = vsel %vm99, %v90, 0
    %vm103 = vcmask 1044480
    %v105 = vsel %vm103, %v97, 0
    %v108 = vsel %vm103, %v98, 0
    %110 = vmatprep.subr.bf16.mxu0 0
    %111 = vmatpush1.bf16.msra.mxu0 0
    %112 = vmatprep.subr.bf16.mxu0 0
    %113 = vmatpush1.bf16.msra.mxu0 0
    %114 = vmatprep.subr.bf16.mxu0 0
    %115 = vmatpush1.bf16.msra.mxu0 0
    %116 = vmatprep.subr.bf16.mxu0 0
    %117 = vmatpush1.bf16.msra.mxu0 0
    %118 = vmatprep.subr.bf16.mxu0 0
    %119 = vmatpush1.bf16.msra.mxu0 0
    %120 = vmatprep.subr.bf16.mxu0 0
    %121 = vmatpush1.bf16.msra.mxu0 0
    %122 = vmatprep.subr.bf16.mxu0 0
    %123 = vmatpush1.bf16.msra.mxu0 0
    %124 = vmatprep.subr.bf16.mxu0 %v108
    %125 = vmatpush1.bf16.msra.mxu0 %v105
    %126 = vmatprep.subr.bf16.mxu0 0
    %127 = vmatpush2.bf16.msra.mxu0 0
    %128 = vmatprep.subr.bf16.mxu0 0
    %129 = vmatpush2.bf16.msra.mxu0 0
    %130 = vmatprep.subr.bf16.mxu0 0
    %131 = vmatpush2.bf16.msra.mxu0 0
    %132 = vmatprep.subr.bf16.mxu0 0
    %133 = vmatpush2.bf16.msra.mxu0 0
    %134 = vmatprep.subr.bf16.mxu0 0
    %135 = vmatpush2.bf16.msra.mxu0 0
    %136 = vmatprep.subr.bf16.mxu0 0
    %137 = vmatpush2.bf16.msra.mxu0 0
    %138 = vmatprep.subr.bf16.mxu0 0
    %139 = vmatpush2.bf16.msra.mxu0 0
    %140 = vmatprep.subr.bf16.mxu0 0
    %141 = vmatpush2.bf16.msra.mxu0 0
    %142 = vmatprep.mubr.bf16.mxu0 0
    %143 = vmatmul.mubr.bf16.gmra.mxu0 %v101
    %v144 = vpop.f32.mrf.mxu0
    %v145 = vadd.f32 %v79, %v144
    %v146 = vpop.f32.mrf.mxu0
    %v147 = vadd.f32 %v83, %v146
    %v148 = vpop.f32.mrf.mxu0
    %v149 = vadd.f32 %v79, %v148
    %v150 = vpop.f32.mrf.mxu0
    %v151 = vadd.f32 %v83, %v150
    %152 = vdwg.mxu0
    %v153 = vmax.f32 %v145, 0.0
    %v154 = vmax.f32 %v147, 0.0
    %v155 = vmax.f32 %v149, 0.0
    %v156 = vmax.f32 %v151, 0.0
    %v157 = vpack.c.bf16 %v155, %v153
    %v158 = vpack.c.bf16 %v156, %v154
    %v159 = vld [vmem:[#allocation8] sm:$0xff]
    %v160 = vld [vmem:[#allocation8 + $0x8] sm:$0xff]
    %v161 = vld [vmem:[#allocation8 + $0x10] sm:$0xff]
    %v162 = vld [vmem:[#allocation8 + $0x18] sm:$0xff]
    %v163 = vld [vmem:[#allocation8 + $0x20] sm:$0xff]
    %v164 = vld [vmem:[#allocation8 + $0x28] sm:$0xff]
    %v165 = vld [vmem:[#allocation8 + $0x30] sm:$0xff]
    %v166 = vld [vmem:[#allocation8 + $0x38] sm:$0xff]
    %v167 = vld [vmem:[#allocation8 + $0x40] sm:$0xff]
    %v168 = vld [vmem:[#allocation8 + $0x48] sm:$0xff]
    %v169 = vld [vmem:[#allocation8 + $0x50] sm:$0xff]
    %v170 = vld [vmem:[#allocation8 + $0x58] sm:$0xff]
    %v171 = vld [vmem:[#allocation8 + $0x60] sm:$0xff]
    %v172 = vld [vmem:[#allocation8 + $0x68] sm:$0xff]
    %v173 = vld [vmem:[#allocation8 + $0x70] sm:$0xff]
    %v174 = vld [vmem:[#allocation8 + $0x78] sm:$0xff]
    %v175 = vld [vmem:[#allocation8 + $0x80] sm:$0xff]
    %v176 = vld [vmem:[#allocation8 + $0x88] sm:$0xff]
    %v177 = vld [vmem:[#allocation8 + $0x90] sm:$0xff]
    %v178 = vld [vmem:[#allocation8 + $0x98] sm:$0xff]
    %v179 = vld [vmem:[#allocation8 + $0xa0] sm:$0xff]
    %v180 = vld [vmem:[#allocation8 + $0xa8] sm:$0xff]
    %v181 = vld [vmem:[#allocation8 + $0xb0] sm:$0xff]
    %v182 = vld [vmem:[#allocation8 + $0xb8] sm:$0xff]
    %v183 = vld [vmem:[#allocation8 + $0xc0] sm:$0xff]
    %v184 = vld [vmem:[#allocation8 + $0xc8] sm:$0xff]
    %v185 = vld [vmem:[#allocation8 + $0xd0] sm:$0xff]
    %v186 = vld [vmem:[#allocation8 + $0xd8] sm:$0xff]
    %v187 = vld [vmem:[#allocation8 + $0xe0] sm:$0xff]
    %v188 = vld [vmem:[#allocation8 + $0xe8] sm:$0xff]
    %v189 = vld [vmem:[#allocation8 + $0xf0] sm:$0xff]
    %v190 = vld [vmem:[#allocation8 + $0xf8] sm:$0xff]
    %v191 = vld [vmem:[%s4] sm:$0x3]
    %v193 = vlaneseq
    %v194 = vshrl.u32 %v193, 7
    %v195 = vsub.s32 0, %v194
    %v196 = vrot.slane %v191, %v195
    %v197 = vlaneseq
    %v198 = vshrl.u32 %v197, 7
    %v199 = vsub.s32 1, %v198
    %v200 = vrot.slane %v191, %v199
    %v235 = vunpack.c.l.b16 %v159
    %v236 = vunpack.c.h.b16 %v159
    %v237 = vunpack.c.l.b16 %v160
    %v238 = vunpack.c.h.b16 %v160
    %v239 = vunpack.c.l.b16 %v161
    %v240 = vunpack.c.h.b16 %v161
    %v241 = vunpack.c.l.b16 %v162
    %v242 = vunpack.c.h.b16 %v162
    %v243 = vunpack.c.l.b16 %v163
    %v244 = vunpack.c.h.b16 %v163
    %v245 = vunpack.c.l.b16 %v164
    %v246 = vunpack.c.h.b16 %v164
    %v247 = vunpack.c.l.b16 %v165
    %v248 = vunpack.c.h.b16 %v165
    %v249 = vunpack.c.l.b16 %v166
    %v250 = vunpack.c.h.b16 %v166
    %v251 = vunpack.c.l.b16 %v167
    %v252 = vunpack.c.h.b16 %v167
    %v253 = vunpack.c.l.b16 %v168
    %v254 = vunpack.c.h.b16 %v168
    %v255 = vunpack.c.l.b16 %v169
    %v256 = vunpack.c.h.b16 %v169
    %v257 = vunpack.c.l.b16 %v170
    %v258 = vunpack.c.h.b16 %v170
    %v259 = vunpack.c.l.b16 %v171
    %v260 = vunpack.c.h.b16 %v171
    %v261 = vunpack.c.l.b16 %v172
    %v262 = vunpack.c.h.b16 %v172
    %v263 = vunpack.c.l.b16 %v173
    %v264 = vunpack.c.h.b16 %v173
    %v265 = vunpack.c.l.b16 %v174
    %v266 = vunpack.c.h.b16 %v174
    %v267 = vunpack.c.l.b16 %v175
    %v268 = vunpack.c.h.b16 %v175
    %v269 = vunpack.c.l.b16 %v176
    %v270 = vunpack.c.h.b16 %v176
    %v271 = vunpack.c.l.b16 %v177
    %v272 = vunpack.c.h.b16 %v177
    %v273 = vunpack.c.l.b16 %v178
    %v274 = vunpack.c.h.b16 %v178
    %v275 = vunpack.c.l.b16 %v179
    %v276 = vunpack.c.h.b16 %v179
    %v277 = vunpack.c.l.b16 %v180
    %v278 = vunpack.c.h.b16 %v180
    %v279 = vunpack.c.l.b16 %v181
    %v280 = vunpack.c.h.b16 %v181
    %v281 = vunpack.c.l.b16 %v182
    %v282 = vunpack.c.h.b16 %v182
    %v283 = vunpack.c.l.b16 %v183
    %v284 = vunpack.c.h.b16 %v183
    %v285 = vunpack.c.l.b16 %v184
    %v286 = vunpack.c.h.b16 %v184
    %v287 = vunpack.c.l.b16 %v185
    %v288 = vunpack.c.h.b16 %v185
    %v289 = vunpack.c.l.b16 %v186
    %v290 = vunpack.c.h.b16 %v186
    %v291 = vunpack.c.l.b16 %v187
    %v292 = vunpack.c.h.b16 %v187
    %v293 = vunpack.c.l.b16 %v188
    %v294 = vunpack.c.h.b16 %v188
    %v295 = vunpack.c.l.b16 %v189
    %v296 = vunpack.c.h.b16 %v189
    %v297 = vunpack.c.l.b16 %v190
    %v298 = vunpack.c.h.b16 %v190
    %v299 = vpack.c.b16 %v237, %v235
    %v300 = vpack.c.b16 %v238, %v236
    %v301 = vpack.c.b16 %v241, %v239
    %v302 = vpack.c.b16 %v242, %v240
    %v303 = vpack.c.b16 %v245, %v243
    %v304 = vpack.c.b16 %v246, %v244
    %v305 = vpack.c.b16 %v249, %v247
    %v306 = vpack.c.b16 %v250, %v248
    %v307 = vpack.c.b16 %v253, %v251
    %v308 = vpack.c.b16 %v254, %v252
    %v309 = vpack.c.b16 %v257, %v255
    %v310 = vpack.c.b16 %v258, %v256
    %v311 = vpack.c.b16 %v261, %v259
    %v312 = vpack.c.b16 %v262, %v260
    %v313 = vpack.c.b16 %v265, %v263
    %v314 = vpack.c.b16 %v266, %v264
    %v315 = vpack.c.b16 %v269, %v267
    %v316 = vpack.c.b16 %v270, %v268
    %v317 = vpack.c.b16 %v273, %v271
    %v318 = vpack.c.b16 %v274, %v272
    %v319 = vpack.c.b16 %v277, %v275
    %v320 = vpack.c.b16 %v278, %v276
    %v321 = vpack.c.b16 %v281, %v279
    %v322 = vpack.c.b16 %v282, %v280
    %v323 = vpack.c.b16 %v285, %v283
    %v324 = vpack.c.b16 %v286, %v284
    %v325 = vpack.c.b16 %v289, %v287
    %v326 = vpack.c.b16 %v290, %v288
    %v327 = vpack.c.b16 %v293, %v291
    %v328 = vpack.c.b16 %v294, %v292
    %v329 = vpack.c.b16 %v297, %v295
    %v330 = vpack.c.b16 %v298, %v296
    %363 = vmatprep.subr.bf16.mxu0 %v314
    %364 = vmatpush1.bf16.msra.mxu0 %v313
    %365 = vmatprep.subr.bf16.mxu0 %v312
    %366 = vmatpush1.bf16.msra.mxu0 %v311
    %367 = vmatprep.subr.bf16.mxu0 %v310
    %368 = vmatpush1.bf16.msra.mxu0 %v309
    %369 = vmatprep.subr.bf16.mxu0 %v308
    %370 = vmatpush1.bf16.msra.mxu0 %v307
    %371 = vmatprep.subr.bf16.mxu0 %v306
    %372 = vmatpush1.bf16.msra.mxu0 %v305
    %373 = vmatprep.subr.bf16.mxu0 %v304
    %374 = vmatpush1.bf16.msra.mxu0 %v303
    %375 = vmatprep.subr.bf16.mxu0 %v302
    %376 = vmatpush1.bf16.msra.mxu0 %v301
    %377 = vmatprep.subr.bf16.mxu0 %v300
    %378 = vmatpush1.bf16.msra.mxu0 %v299
    %379 = vmatprep.subr.bf16.mxu0 %v330
    %380 = vmatpush2.bf16.msra.mxu0 %v329
    %381 = vmatprep.subr.bf16.mxu0 %v328
    %382 = vmatpush2.bf16.msra.mxu0 %v327
    %383 = vmatprep.subr.bf16.mxu0 %v326
    %384 = vmatpush2.bf16.msra.mxu0 %v325
    %385 = vmatprep.subr.bf16.mxu0 %v324
    %386 = vmatpush2.bf16.msra.mxu0 %v323
    %387 = vmatprep.subr.bf16.mxu0 %v322
    %388 = vmatpush2.bf16.msra.mxu0 %v321
    %389 = vmatprep.subr.bf16.mxu0 %v320
    %390 = vmatpush2.bf16.msra.mxu0 %v319
    %391 = vmatprep.subr.bf16.mxu0 %v318
    %392 = vmatpush2.bf16.msra.mxu0 %v317
    %393 = vmatprep.subr.bf16.mxu0 %v316
    %394 = vmatpush2.bf16.msra.mxu0 %v315
    %395 = vmatprep.mubr.bf16.mxu0 %v158
    %396 = vmatmul.mubr.bf16.gmra.mxu0 %v157
    %v397 = vpop.f32.mrf.mxu0
    %v398 = vadd.f32 %v196, %v397
    %v399 = vpop.f32.mrf.mxu0
    %v400 = vadd.f32 %v200, %v399
    %v401 = vpop.f32.mrf.mxu0
    %v402 = vadd.f32 %v196, %v401
    %v403 = vpop.f32.mrf.mxu0
    %v404 = vadd.f32 %v200, %v403
    %405 = vdwg.mxu0
    %v406 = vmax.f32 %v398, 0.0
    %v407 = vmax.f32 %v400, 0.0
    %v408 = vmax.f32 %v402, 0.0
    %v409 = vmax.f32 %v404, 0.0
    %v410 = vld [vmem:[%s5] sm:$0x3]
    %v412 = vlaneseq
    %v413 = vshrl.u32 %v412, 7
    %v414 = vsub.s32 0, %v413
    %v415 = vrot.slane %v410, %v414
    %v416 = vlaneseq
    %v417 = vshrl.u32 %v416, 7
    %v418 = vsub.s32 1, %v417
    %v419 = vrot.slane %v410, %v418
    %v422 = vmul.f32 %v406, %v415
    %v423 = vmul.f32 %v407, %v419
    %v424 = vmul.f32 %v408, %v415
    %v425 = vmul.f32 %v409, %v419
    %v426 = vadd.f32 %v422, %v423
    %427 = vadd.xlane.f32.xlu0 %v426
    %v428 = vpop.xlane.xlu0 %427
    %v429 = vadd.f32 %v424, %v425
    %430 = vadd.xlane.f32.xlu0 %v429
    %v431 = vpop.xlane.xlu0 %430
    %s432 = sld [smem:[#allocation2]]
    %v433 = vstv %s432
    %v434 = vadd.f32 %v428, %v433
    %v435 = vadd.f32 %v431, %v433
    %436 = vxpose.xlu0.b32.start [1/16] %v434, 128
    %437 = vxpose.xlu0.b32.cont [2/16] %v435, 128
    %438 = vxpose.xlu0.b32.cont [3/16] 0.0, 128
    %439 = vxpose.xlu0.b32.cont [4/16] 0.0, 128
    %440 = vxpose.xlu0.b32.cont [5/16] 0.0, 128
    %441 = vxpose.xlu0.b32.cont [6/16] 0.0, 128
    %442 = vxpose.xlu0.b32.cont [7/16] 0.0, 128
    %443 = vxpose.xlu0.b32.cont [8/16] 0.0, 128
    %444 = vxpose.xlu0.b32.cont [9/16] 0.0, 128
    %445 = vxpose.xlu0.b32.cont [10/16] 0.0, 128
    %446 = vxpose.xlu0.b32.cont [11/16] 0.0, 128
    %447 = vxpose.xlu0.b32.cont [12/16] 0.0, 128
    %448 = vxpose.xlu0.b32.cont [13/16] 0.0, 128
    %449 = vxpose.xlu0.b32.cont [14/16] 0.0, 128
    %450 = vxpose.xlu0.b32.cont [15/16] 0.0, 128
    %451 = vxpose.xlu0.b32.end [16/16] 0.0, 128
    %v452 = vpop.trf.xlu0
    %v453 = vpop.trf.xlu0
    %v454 = vpop.trf.xlu0
    %v455 = vpop.trf.xlu0
    %v456 = vpop.trf.xlu0
    %v457 = vpop.trf.xlu0
    %v458 = vpop.trf.xlu0
    %v459 = vpop.trf.xlu0
    %v460 = vpop.trf.xlu0
    %v461 = vpop.trf.xlu0
    %v462 = vpop.trf.xlu0
    %v463 = vpop.trf.xlu0
    %v464 = vpop.trf.xlu0
    %v465 = vpop.trf.xlu0
    %v466 = vpop.trf.xlu0
    %v467 = vpop.trf.xlu0
    %vm468 = vcmask 122880
    %469 = vst.msk [vmem:[#allocation9] sm:$0x1] %vm468, %v452
    // Predicated region
    $region42: #{tpu_custom_call.1} parent=1 // pred_check
      _
    $region43: #{tpu_custom_call.1} parent=1 // pred_check_branch
      %471 = sbr.rel (0) target = $region45
    $region44: #{tpu_custom_call.1} parent=1 // pred_region
      %s473 = ssub.s32 16, 16
      %474 = vsyncadd [#allocation5], %s473
      %s476 = sshll.u32 [#allocation9], 4
      %s477 = int_to_ptr.vmem [resolvable:$true] %s476
      %479 = dma.vmem_to_hbm [thread:$0]  %s477, 16, %s7, [#allocation5]
    $region45: #{tpu_custom_call.1} parent=1 // pred_fallthru
      _
    // Predicated region
    $region46: #{tpu_custom_call.1} parent=1 // pred_check
      _
    $region47: #{tpu_custom_call.1} parent=1 // pred_check_branch
      %481 = sbr.rel (0) target = $region49
    $region48: #{tpu_custom_call.1} parent=1 // pred_region
      %482 = dma.done [#allocation5], 16
    $region49: #{tpu_custom_call.1} parent=1 // pred_fallthru
      _
    %483 = vsyncpa [#allocation4], 1
    %484 = vsyncpa [#allocation7], 1
    %485 = vsyncpa [#allocation5], 1

</llo_original>
